<compile_context>
chip_gen: v6e
topology: v6e:2x2x1
jax: 0.10.0
libtpu: 0.0.40
codegen_flags: <defaults>
</compile_context>

<pallas_src>
import math
import numpy as np
import jax
import jax.numpy as jnp
from jax.experimental import pallas as pl
from jax.experimental.pallas import tpu as pltpu

SIZE = (15, 10)
QA_FEATURES = 7
HIDDEN = 32
NEAREST_K = 3
F_PAD = 8                      # feature (stage-1 contraction) dim padded to sublane multiple
K_PAD = 8                      # nearest_k (stage-2 contraction) dim padded to sublane multiple
C = SIZE[0] * SIZE[1]          # 150 grid cells
C_PAD = -(-C // 8) * 8         # 152: sublane-pad output rows (init-time, free)


# --------------------------------------------------------------------------------------
# Host-side geometry setup (mirrors SpatialViewModel.__init__).  The original module
# depends on external generalID / get_id_by_idx / get_latlon_by_id helpers; we define
# simple, deterministic, self-consistent versions here.  Pure init-time Python.
# --------------------------------------------------------------------------------------
def dis(x, y, xx, yy):
    return math.sqrt((x - xx) ** 2 + (y - yy) ** 2)


def get_id_by_idx(i, j):
    return i * SIZE[1] + j


def get_latlon_by_id(pid):
    return (pid // SIZE[1]) * 0.1, (pid % SIZE[1]) * 0.1


def generalID(lat, lon):
    i = min(max(int(round(lat / 0.1)), 0), SIZE[0] - 1)
    j = min(max(int(round(lon / 0.1)), 0), SIZE[1] - 1)
    return i * SIZE[1] + j


def build_spatial_params(stations):
    """Distance table, sorting, delta and the (padded) proximity matrix, as in __init__."""
    n_st = len(stations)
    d = [[[0.0] * n_st for _ in range(SIZE[1])] for _ in range(SIZE[0])]
    dists = []
    station_ids = [generalID(s[0], s[1]) for s in stations]
    for i in range(SIZE[0]):
        for j in range(SIZE[1]):
            for k in range(n_st):
                lon, lat = (stations[k][0], stations[k][1])  # same (quirky) unpack as original
                p_id = get_id_by_idx(i, j)
                p_lat, p_lon = get_latlon_by_id(p_id)
                dd = dis(p_lat, p_lon, lat, lon)
                dists.append(dd)
                d[i][j][k] = dd
            d[i][j].sort()
    delta = float(np.std(dists))

    # Proximity matrix, zero-padded once at init: rows -> C_PAD, cols -> K_PAD.
    # P_pad[i*size1 + j, k] = exp(-d_sorted[i][j][k]^2 / delta^2) for k < nearest_k.
    P_pad = np.zeros((C_PAD, K_PAD), np.float32)
    for i in range(SIZE[0]):
        for j in range(SIZE[1]):
            for k in range(NEAREST_K):
                P_pad[i * SIZE[1] + j, k] = math.exp(-d[i][j][k] ** 2 / delta ** 2)

    # Station gather indices (reproducing the original `// size[0]`, `% size[1]` arithmetic),
    # kept as Python ints so the wrapper uses static slices (no gather op).
    sx = [station_ids[k] // SIZE[0] for k in range(NEAREST_K)]
    sy = [station_ids[k] % SIZE[1] for k in range(NEAREST_K)]
    return jnp.asarray(P_pad), sx, sy


def pad_weight(W):
    """Init-time (hoisted) zero-pad of the parameter W: (F, H) -> (F_PAD, H)."""
    return jnp.zeros((F_PAD, HIDDEN), jnp.float32).at[:QA_FEATURES, :].set(
        W.astype(jnp.float32))


# --------------------------------------------------------------------------------------
# Pallas forward: one grid step, two MXU matmuls, one lane-dense (C_PAD, BH_PAD) store.
# --------------------------------------------------------------------------------------
def make_spatial_view_forward(P_pad, sx, sy, W_pad):
    K, F, H = NEAREST_K, QA_FEATURES, HIDDEN

    @jax.jit
    def forward(quality_val):
        B = quality_val.shape[0]
        BF = B * F_PAD
        BH = B * H
        BH_PAD = -(-BH // 128) * 128   # lane-pad output columns -> unmasked 128-lane stores

        # ---- pre-kernel packing: K static slices + one concat (fuses into one XLA op) --
        # L[k, b*F_PAD + f] = quality_val[b, sx[k], sy[k], f]; rows k >= K are zero.
        rows = []
        for k in range(K):
            qk = quality_val[:, sx[k], sy[k], :].astype(jnp.float32)     # (B, F), static slice
            qk = jnp.pad(qk, ((0, 0), (0, F_PAD - F)))                   # (B, F_PAD)
            rows.append(qk.reshape(1, BF))
        rows.append(jnp.zeros((K_PAD - K, BF), jnp.float32))
        L = jnp.concatenate(rows, axis=0)                                # (K_PAD, B*F_PAD)

        # Block-diagonal weight: W_blk[b*F_PAD+f, b'*H+h] = (b == b') * W_pad[f, h].
        # Built from the closed-over parameter at trace time -> constant-folded by XLA.
        W_blk = jnp.kron(jnp.eye(B, dtype=jnp.float32), W_pad)           # (B*F_PAD, B*H)
        W_blk = jnp.pad(W_blk, ((0, 0), (0, BH_PAD - BH)))               # (B*F_PAD, BH_PAD)

        # ---- kernel: stage 1 and stage 2 are each a single MXU matmul -------------------
        # s[k, b*H+h]   = sum_f quality_val[b, sx[k], sy[k], f] * W[f, h]
        # out[c, b*H+h] = sum_k P[c, k] * s[k, b*H+h]
        def kernel(l_ref, w_ref, p_ref, o_ref):
            s = jnp.dot(l_ref[...], w_ref[...],
                        preferred_element_type=jnp.float32)              # (K_PAD, BH_PAD)
            o_ref[...] = jnp.dot(p_ref[...], s,
                                 preferred_element_type=jnp.float32)     # (C_PAD, BH_PAD)

        out = pl.pallas_call(
            kernel,
            out_shape=jax.ShapeDtypeStruct((C_PAD, BH_PAD), jnp.float32),
            grid=(1,),
            in_specs=[
                pl.BlockSpec((K_PAD, BF), lambda i: (0, 0)),
                pl.BlockSpec((BF, BH_PAD), lambda i: (0, 0)),
                pl.BlockSpec((C_PAD, K_PAD), lambda i: (0, 0)),
            ],
            out_specs=pl.BlockSpec((C_PAD, BH_PAD), lambda i: (0, 0)),
            compiler_params=pltpu.CompilerParams(
                dimension_semantics=("arbitrary",)),
        )(L, W_blk, P_pad)

        # ---- post-kernel: strip padding, (C, B*H) slab -> (B, size0, size1, H) ----------
        out = out[:C, :BH].reshape(C, B, H)
        return out.transpose(1, 0, 2).reshape(B, SIZE[0], SIZE[1], H)

    return forward


# --------------------------------------------------------------------------------------
# Pure-JAX reference (mirrors the PyTorch triple loop).
# --------------------------------------------------------------------------------------
def spatial_view_reference(quality_val, P_pad, sx, sy, W):
    B = quality_val.shape[0]
    Q = jnp.stack([quality_val[:, sx[k], sy[k], :] for k in range(NEAREST_K)], axis=1)  # (B,K,F)
    S = jnp.einsum("bkf,fh->bkh", Q.astype(jnp.float32), W)               # (B, K, H)
    R = jnp.einsum("ck,bkh->bch", P_pad[:C, :NEAREST_K], S)               # (B, C, H)
    return R.reshape(B, SIZE[0], SIZE[1], HIDDEN)


if __name__ == "__main__":
    key = jax.random.PRNGKey(0)
    k_w, k_x = jax.random.split(key)

    # Deterministic station coordinates (lat in [0, 1.5), lon in [0, 1.0)).
    stations = [(0.12, 0.34), (0.78, 0.56), (1.23, 0.11), (0.45, 0.89), (1.01, 0.67)]

    P_pad, sx, sy = build_spatial_params(stations)

    # Parameter W ~ randn(qa_features, hidden_size), deterministic; padding hoisted to init.
    W = jax.random.normal(k_w, (QA_FEATURES, HIDDEN), dtype=jnp.float32)
    W_pad = pad_weight(W)

    forward = make_spatial_view_forward(P_pad, sx, sy, W_pad)

    # Example input: (batch=2, size0=15, size1=10, qa_features=7)
    quality_val = jax.random.normal(k_x, (2, SIZE[0], SIZE[1], QA_FEATURES), dtype=jnp.float32)

    out = forward(quality_val)
    out = jax.block_until_ready(out)

    ref = spatial_view_reference(quality_val, P_pad, sx, sy, W)
    assert out.shape == (2, SIZE[0], SIZE[1], HIDDEN)
    np.testing.assert_allclose(np.asarray(out), np.asarray(ref), rtol=1e-5, atol=1e-5)

    print("KERNEL_OK")
</pallas_src>

<mosaic_0001>
module attributes {stable_mosaic.version = 11 : i64} {
  func.func @kernel(%arg0: i32, %arg1: memref<8x16xf32, #tpu.memory_space<vmem>>, %arg2: memref<16x128xf32, #tpu.memory_space<vmem>>, %arg3: memref<152x8xf32, #tpu.memory_space<vmem>>, %arg4: memref<152x128xf32, #tpu.memory_space<vmem>>) attributes {dimension_semantics = [#tpu.dimension_semantics<arbitrary>], iteration_bounds = array<i64: 1>, scalar_prefetch = 0 : i64, scratch_operands = 0 : i64, tpu.core_type = #tpu.core_type<tc>, window_params = [{pipeline_mode = #tpu.pipeline_mode<synchronous>, transform_indices = @transform_0, window_bounds = array<i64: 8, 16>}, {pipeline_mode = #tpu.pipeline_mode<synchronous>, transform_indices = @transform_1, window_bounds = array<i64: 16, 128>}, {pipeline_mode = #tpu.pipeline_mode<synchronous>, transform_indices = @transform_2, window_bounds = array<i64: 152, 8>}, {pipeline_mode = #tpu.pipeline_mode<synchronous>, transform_indices = @transform_3, window_bounds = array<i64: 152, 128>}]} {
    %c0 = arith.constant 0 : index
    %c0_0 = arith.constant 0 : index
    %0 = vector.load %arg1[%c0, %c0_0] : memref<8x16xf32, #tpu.memory_space<vmem>>, vector<8x16xf32>
    %c0_1 = arith.constant 0 : index
    %c0_2 = arith.constant 0 : index
    %1 = vector.load %arg2[%c0_1, %c0_2] : memref<16x128xf32, #tpu.memory_space<vmem>>, vector<16x128xf32>
    %cst = arith.constant dense<0.000000e+00> : vector<8x128xf32>
    %2 = tpu.matmul %0, %1, %cst {dimension_numbers = #tpu.dot_dimension_numbers<[1], [0], [0], [1], [0, 0, 1, 1], [], []>} : vector<8x16xf32>, vector<16x128xf32>, vector<8x128xf32> -> vector<8x128xf32>
    %c0_3 = arith.constant 0 : index
    %c0_4 = arith.constant 0 : index
    %3 = vector.load %arg3[%c0_3, %c0_4] : memref<152x8xf32, #tpu.memory_space<vmem>>, vector<152x8xf32>
    %cst_5 = arith.constant dense<0.000000e+00> : vector<152x128xf32>
    %4 = tpu.matmul %3, %2, %cst_5 {dimension_numbers = #tpu.dot_dimension_numbers<[1], [0], [0], [1], [0, 0, 1, 1], [], []>} : vector<152x8xf32>, vector<8x128xf32>, vector<152x128xf32> -> vector<152x128xf32>
    %c0_6 = arith.constant 0 : index
    %c0_7 = arith.constant 0 : index
    %5 = vector.load %arg4[%c0_6, %c0_7] : memref<152x128xf32, #tpu.memory_space<vmem>>, vector<152x128xf32>
    tpu.vector_store %arg4[%c0_6, %c0_7], %4 {strides = array<i32>} : memref<152x128xf32, #tpu.memory_space<vmem>>, vector<152x128xf32>,
    return
  }
  func.func @transform_0(%arg0: i32) -> (i32, i32) {
    %c0_i32 = arith.constant 0 : i32
    %c0_i32_0 = arith.constant 0 : i32
    %c0_i32_1 = arith.constant 0 : i32
    return %c0_i32, %c0_i32_0 : i32, i32
  }
  func.func @transform_1(%arg0: i32) -> (i32, i32) {
    %c0_i32 = arith.constant 0 : i32
    %c0_i32_0 = arith.constant 0 : i32
    %c0_i32_1 = arith.constant 0 : i32
    return %c0_i32, %c0_i32_0 : i32, i32
  }
  func.func @transform_2(%arg0: i32) -> (i32, i32) {
    %c0_i32 = arith.constant 0 : i32
    %c0_i32_0 = arith.constant 0 : i32
    %c0_i32_1 = arith.constant 0 : i32
    return %c0_i32, %c0_i32_0 : i32, i32
  }
  func.func @transform_3(%arg0: i32) -> (i32, i32) {
    %c0_i32 = arith.constant 0 : i32
    %c0_i32_0 = arith.constant 0 : i32
    %c0_i32_1 = arith.constant 0 : i32
    return %c0_i32, %c0_i32_0 : i32, i32
  }
}

</mosaic_0001>

<llo_original>
// kernel: forward.1
$region0: #{forward.1}
  #allocation0 [shape = 'u32[]', space=smem, size = 0x4, offset = 0x4, fixed_abs, tag = 'smem constant byte address 0x4 - core index']
  #allocation1 [shape = 'u32[144,128]{1,0:T(1,128)}', space=vmem, size = 0x12000, scoped, tag = 'internal scratch']
  %s0 = inlined_call_operand.vmem [shape: f32[8,16], index: 0, kind: input, shape index: {}]
  %s1 = inlined_call_operand.vmem [shape: f32[16,128], index: 1, kind: input, shape index: {}]
  %s2 = inlined_call_operand.vmem [shape: f32[152,8], index: 2, kind: input, shape index: {}]
  %s3 = inlined_call_operand.vmem [shape: f32[152,128], index: 3, kind: output, shape index: {}]
  %s4 = sld [smem:[#allocation0]]
  $region22: #{forward.1} parent=0
    _
  %s6 = ssub.s32 1, %s4
  %s7 = scalar_select 0, %s6, %s4
  // Predicated region
  $region2: #{forward.1} parent=0 // pred_check
    _
  $region3: #{forward.1} parent=0 // pred_check_branch
    %9 = sbr.rel (0) target = $region5
  $region4: #{forward.1} parent=0 // pred_region
    _
  $region5: #{forward.1} parent=0 // pred_fallthru
    _
  // Predicated region
  $region6: #{forward.1} parent=0 // pred_check
    _
  $region7: #{forward.1} parent=0 // pred_check_branch
    %11 = sbr.rel (0) target = $region9
  $region8: #{forward.1} parent=0 // pred_region
    _
  $region9: #{forward.1} parent=0 // pred_fallthru
    _
  // Predicated region
  $region10: #{forward.1} parent=0 // pred_check
    _
  $region11: #{forward.1} parent=0 // pred_check_branch
    %13 = sbr.rel (0) target = $region13
  $region12: #{forward.1} parent=0 // pred_region
    _
  $region13: #{forward.1} parent=0 // pred_fallthru
    _
  %v14 = vld [vmem:[%s0] sm:$0xff]
  %v15 = vld [vmem:[%s1] sm:$0xff]
  %v16 = vld [vmem:[%s1 + $0x8] sm:$0xff]
  %vm17 = vcmask 130048
  %v19 = vsel %vm17, %v14, 0
  %21 = vmatprep.subr.mxu0 0.0
  %22 = vmatpush1.msra.mxu0 0.0
  %23 = vmatprep.subr.mxu0 0.0
  %24 = vmatpush1.msra.mxu0 0.0
  %25 = vmatprep.subr.mxu0 0.0
  %26 = vmatpush1.msra.mxu0 0.0
  %27 = vmatprep.subr.mxu0 0.0
  %28 = vmatpush1.msra.mxu0 0.0
  %29 = vmatprep.subr.mxu0 0.0
  %30 = vmatpush1.msra.mxu0 0.0
  %31 = vmatprep.subr.mxu0 0.0
  %32 = vmatpush1.msra.mxu0 0.0
  %33 = vmatprep.subr.mxu0 0.0
  %34 = vmatpush1.msra.mxu0 0.0
  %35 = vmatprep.subr.mxu0 0.0
  %36 = vmatpush1.msra.mxu0 0.0
  %37 = vmatprep.subr.mxu0 0.0
  %38 = vmatpush1.msra.mxu0 0.0
  %39 = vmatprep.subr.mxu0 0.0
  %40 = vmatpush1.msra.mxu0 0.0
  %41 = vmatprep.subr.mxu0 0.0
  %42 = vmatpush1.msra.mxu0 0.0
  %43 = vmatprep.subr.mxu0 0.0
  %44 = vmatpush1.msra.mxu0 0.0
  %45 = vmatprep.subr.mxu0 0.0
  %46 = vmatpush1.msra.mxu0 0.0
  %47 = vmatprep.subr.mxu0 0.0
  %48 = vmatpush1.msra.mxu0 0.0
  %49 = vmatprep.subr.mxu0 0.0
  %50 = vmatpush1.msra.mxu0 %v16
  %51 = vmatprep.subr.mxu0 0.0
  %52 = vmatpush1.msra.mxu0 %v15
  %53 = vmatprep.subr.mxu0 0.0
  %54 = vmatpush2.msra.mxu0 0.0
  %55 = vmatprep.subr.mxu0 0.0
  %56 = vmatpush2.msra.mxu0 0.0
  %57 = vmatprep.subr.mxu0 0.0
  %58 = vmatpush2.msra.mxu0 0.0
  %59 = vmatprep.subr.mxu0 0.0
  %60 = vmatpush2.msra.mxu0 0.0
  %61 = vmatprep.subr.mxu0 0.0
  %62 = vmatpush2.msra.mxu0 0.0
  %63 = vmatprep.subr.mxu0 0.0
  %64 = vmatpush2.msra.mxu0 0.0
  %65 = vmatprep.subr.mxu0 0.0
  %66 = vmatpush2.msra.mxu0 0.0
  %67 = vmatprep.subr.mxu0 0.0
  %68 = vmatpush2.msra.mxu0 0.0
  %69 = vmatprep.subr.mxu0 0.0
  %70 = vmatpush2.msra.mxu0 0.0
  %71 = vmatprep.subr.mxu0 0.0
  %72 = vmatpush2.msra.mxu0 0.0
  %73 = vmatprep.subr.mxu0 0.0
  %74 = vmatpush2.msra.mxu0 0.0
  %75 = vmatprep.subr.mxu0 0.0
  %76 = vmatpush2.msra.mxu0 0.0
  %77 = vmatprep.subr.mxu0 0.0
  %78 = vmatpush2.msra.mxu0 0.0
  %79 = vmatprep.subr.mxu0 0.0
  %80 = vmatpush2.msra.mxu0 0.0
  %81 = vmatprep.subr.mxu0 0.0
  %82 = vmatpush2.msra.mxu0 0.0
  %83 = vmatprep.subr.mxu0 0.0
  %84 = vmatpush2.msra.mxu0 0.0
  %85 = vmatprep.mubr.f32.mxu0 0.0
  %86 = vmatmul.mubr.f32.gmra.mxu0 %v19
  %v87 = vpop.f32.mrf.mxu0
  %v88 = vadd.f32 0.0, %v87
  %v89 = vpop.f32.mrf.mxu0
  %90 = vdwg.mxu0
  %v91 = vld [vmem:[%s2] sm:$0xff]
  %v92 = vld [vmem:[%s2 + $0x8] sm:$0xff]
  %v93 = vld [vmem:[%s2 + $0x10] sm:$0xff]
  %v94 = vld [vmem:[%s2 + $0x18] sm:$0xff]
  %v95 = vld [vmem:[%s2 + $0x20] sm:$0xff]
  %v96 = vld [vmem:[%s2 + $0x28] sm:$0xff]
  %v97 = vld [vmem:[%s2 + $0x30] sm:$0xff]
  %v98 = vld [vmem:[%s2 + $0x38] sm:$0xff]
  %v99 = vld [vmem:[%s2 + $0x40] sm:$0xff]
  %v100 = vld [vmem:[%s2 + $0x48] sm:$0xff]
  %v101 = vld [vmem:[%s2 + $0x50] sm:$0xff]
  %v102 = vld [vmem:[%s2 + $0x58] sm:$0xff]
  %v103 = vld [vmem:[%s2 + $0x60] sm:$0xff]
  %v104 = vld [vmem:[%s2 + $0x68] sm:$0xff]
  %v105 = vld [vmem:[%s2 + $0x70] sm:$0xff]
  %v106 = vld [vmem:[%s2 + $0x78] sm:$0xff]
  %v107 = vld [vmem:[%s2 + $0x80] sm:$0xff]
  %v108 = vld [vmem:[%s2 + $0x88] sm:$0xff]
  %v109 = vld [vmem:[%s2 + $0x90] sm:$0xff]
  %vm110 = vcmask 64512
  %v112 = vsel %vm110, %v91, 0
  %v115 = vsel %vm110, %v92, 0
  %v118 = vsel %vm110, %v93, 0
  %v121 = vsel %vm110, %v94, 0
  %v124 = vsel %vm110, %v95, 0
  %v127 = vsel %vm110, %v96, 0
  %v130 = vsel %vm110, %v97, 0
  %v133 = vsel %vm110, %v98, 0
  %v136 = vsel %vm110, %v99, 0
  %v139 = vsel %vm110, %v100, 0
  %v142 = vsel %vm110, %v101, 0
  %v145 = vsel %vm110, %v102, 0
  %v148 = vsel %vm110, %v103, 0
  %v151 = vsel %vm110, %v104, 0
  %v154 = vsel %vm110, %v105, 0
  %v157 = vsel %vm110, %v106, 0
  %v160 = vsel %vm110, %v107, 0
  %v163 = vsel %vm110, %v108, 0
  %v166 = vsel %vm110, %v109, 0
  %168 = vmatprep.subr.mxu0 0.0
  %169 = vmatpush1.msra.mxu0 0.0
  %170 = vmatprep.subr.mxu0 0.0
  %171 = vmatpush1.msra.mxu0 0.0
  %172 = vmatprep.subr.mxu0 0.0
  %173 = vmatpush1.msra.mxu0 0.0
  %174 = vmatprep.subr.mxu0 0.0
  %175 = vmatpush1.msra.mxu0 0.0
  %176 = vmatprep.subr.mxu0 0.0
  %177 = vmatpush1.msra.mxu0 0.0
  %178 = vmatprep.subr.mxu0 0.0
  %179 = vmatpush1.msra.mxu0 0.0
  %180 = vmatprep.subr.mxu0 0.0
  %181 = vmatpush1.msra.mxu0 0.0
  %182 = vmatprep.subr.mxu0 0.0
  %183 = vmatpush1.msra.mxu0 0.0
  %184 = vmatprep.subr.mxu0 0.0
  %185 = vmatpush1.msra.mxu0 0.0
  %186 = vmatprep.subr.mxu0 0.0
  %187 = vmatpush1.msra.mxu0 0.0
  %188 = vmatprep.subr.mxu0 0.0
  %189 = vmatpush1.msra.mxu0 0.0
  %190 = vmatprep.subr.mxu0 0.0
  %191 = vmatpush1.msra.mxu0 0.0
  %192 = vmatprep.subr.mxu0 0.0
  %193 = vmatpush1.msra.mxu0 0.0
  %194 = vmatprep.subr.mxu0 0.0
  %195 = vmatpush1.msra.mxu0 0.0
  %196 = vmatprep.subr.mxu0 0.0
  %197 = vmatpush1.msra.mxu0 0.0
  %198 = vmatprep.subr.mxu0 0.0
  %199 = vmatpush1.msra.mxu0 %v88
  %200 = vmatprep.subr.mxu0 0.0
  %201 = vmatpush2.msra.mxu0 0.0
  %202 = vmatprep.subr.mxu0 0.0
  %203 = vmatpush2.msra.mxu0 0.0
  %204 = vmatprep.subr.mxu0 0.0
  %205 = vmatpush2.msra.mxu0 0.0
  %206 = vmatprep.subr.mxu0 0.0
  %207 = vmatpush2.msra.mxu0 0.0
  %208 = vmatprep.subr.mxu0 0.0
  %209 = vmatpush2.msra.mxu0 0.0
  %210 = vmatprep.subr.mxu0 0.0
  %211 = vmatpush2.msra.mxu0 0.0
  %212 = vmatprep.subr.mxu0 0.0
  %213 = vmatpush2.msra.mxu0 0.0
  %214 = vmatprep.subr.mxu0 0.0
  %215 = vmatpush2.msra.mxu0 0.0
  %216 = vmatprep.subr.mxu0 0.0
  %217 = vmatpush2.msra.mxu0 0.0
  %218 = vmatprep.subr.mxu0 0.0
  %219 = vmatpush2.msra.mxu0 0.0
  %220 = vmatprep.subr.mxu0 0.0
  %221 = vmatpush2.msra.mxu0 0.0
  %222 = vmatprep.subr.mxu0 0.0
  %223 = vmatpush2.msra.mxu0 0.0
  %224 = vmatprep.subr.mxu0 0.0
  %225 = vmatpush2.msra.mxu0 0.0
  %226 = vmatprep.subr.mxu0 0.0
  %227 = vmatpush2.msra.mxu0 0.0
  %228 = vmatprep.subr.mxu0 0.0
  %229 = vmatpush2.msra.mxu0 0.0
  %230 = vmatprep.subr.mxu0 0.0
  %231 = vmatpush2.msra.mxu0 0.0
  %232 = vmatprep.mubr.f32.mxu0 0.0
  %233 = vmatmul.mubr.f32.gmra.mxu0 %v112
  %v234 = vpop.f32.mrf.mxu0
  %v235 = vadd.f32 0.0, %v234
  %v236 = vpop.f32.mrf.mxu0
  %237 = vmatprep.mubr.f32.mxu0 0.0
  %238 = vmatmul.mubr.f32.gmra.mxu0 %v115
  %v239 = vpop.f32.mrf.mxu0
  %v240 = vadd.f32 0.0, %v239
  %v241 = vpop.f32.mrf.mxu0
  %242 = vmatprep.mubr.f32.mxu0 0.0
  %243 = vmatmul.mubr.f32.gmra.mxu0 %v118
  %v244 = vpop.f32.mrf.mxu0
  %v245 = vadd.f32 0.0, %v244
  %v246 = vpop.f32.mrf.mxu0
  %247 = vmatprep.mubr.f32.mxu0 0.0
  %248 = vmatmul.mubr.f32.gmra.mxu0 %v121
  %v249 = vpop.f32.mrf.mxu0
  %v250 = vadd.f32 0.0, %v249
  %v251 = vpop.f32.mrf.mxu0
  %252 = vmatprep.mubr.f32.mxu0 0.0
  %253 = vmatmul.mubr.f32.gmra.mxu0 %v124
  %v254 = vpop.f32.mrf.mxu0
  %v255 = vadd.f32 0.0, %v254
  %v256 = vpop.f32.mrf.mxu0
  %257 = vmatprep.mubr.f32.mxu0 0.0
  %258 = vmatmul.mubr.f32.gmra.mxu0 %v127
  %v259 = vpop.f32.mrf.mxu0
  %v260 = vadd.f32 0.0, %v259
  %v261 = vpop.f32.mrf.mxu0
  %262 = vmatprep.mubr.f32.mxu0 0.0
  %263 = vmatmul.mubr.f32.gmra.mxu0 %v130
  %v264 = vpop.f32.mrf.mxu0
  %v265 = vadd.f32 0.0, %v264
  %v266 = vpop.f32.mrf.mxu0
  %267 = vmatprep.mubr.f32.mxu0 0.0
  %268 = vmatmul.mubr.f32.gmra.mxu0 %v133
  %v269 = vpop.f32.mrf.mxu0
  %v270 = vadd.f32 0.0, %v269
  %v271 = vpop.f32.mrf.mxu0
  %272 = vmatprep.mubr.f32.mxu0 0.0
  %273 = vmatmul.mubr.f32.gmra.mxu0 %v136
  %v274 = vpop.f32.mrf.mxu0
  %v275 = vadd.f32 0.0, %v274
  %v276 = vpop.f32.mrf.mxu0
  %277 = vmatprep.mubr.f32.mxu0 0.0
  %278 = vmatmul.mubr.f32.gmra.mxu0 %v139
  %v279 = vpop.f32.mrf.mxu0
  %v280 = vadd.f32 0.0, %v279
  %v281 = vpop.f32.mrf.mxu0
  %282 = vmatprep.mubr.f32.mxu0 0.0
  %283 = vmatmul.mubr.f32.gmra.mxu0 %v142
  %v284 = vpop.f32.mrf.mxu0
  %v285 = vadd.f32 0.0, %v284
  %v286 = vpop.f32.mrf.mxu0
  %287 = vmatprep.mubr.f32.mxu0 0.0
  %288 = vmatmul.mubr.f32.gmra.mxu0 %v145
  %v289 = vpop.f32.mrf.mxu0
  %v290 = vadd.f32 0.0, %v289
  %v291 = vpop.f32.mrf.mxu0
  %292 = vmatprep.mubr.f32.mxu0 0.0
  %293 = vmatmul.mubr.f32.gmra.mxu0 %v148
  %v294 = vpop.f32.mrf.mxu0
  %v295 = vadd.f32 0.0, %v294
  %v296 = vpop.f32.mrf.mxu0
  %297 = vmatprep.mubr.f32.mxu0 0.0
  %298 = vmatmul.mubr.f32.gmra.mxu0 %v151
  %v299 = vpop.f32.mrf.mxu0
  %v300 = vadd.f32 0.0, %v299
  %v301 = vpop.f32.mrf.mxu0
  %302 = vmatprep.mubr.f32.mxu0 0.0
  %303 = vmatmul.mubr.f32.gmra.mxu0 %v154
  %v304 = vpop.f32.mrf.mxu0
  %v305 = vadd.f32 0.0, %v304
  %v306 = vpop.f32.mrf.mxu0
  %307 = vmatprep.mubr.f32.mxu0 0.0
  %308 = vmatmul.mubr.f32.gmra.mxu0 %v157
  %v309 = vpop.f32.mrf.mxu0
  %v310 = vadd.f32 0.0, %v309
  %v311 = vpop.f32.mrf.mxu0
  %312 = vmatprep.mubr.f32.mxu0 0.0
  %313 = vmatmul.mubr.f32.gmra.mxu0 %v160
  %v314 = vpop.f32.mrf.mxu0
  %v315 = vadd.f32 0.0, %v314
  %v316 = vpop.f32.mrf.mxu0
  %317 = vmatprep.mubr.f32.mxu0 0.0
  %318 = vmatmul.mubr.f32.gmra.mxu0 %v163
  %v319 = vpop.f32.mrf.mxu0
  %v320 = vadd.f32 0.0, %v319
  %v321 = vpop.f32.mrf.mxu0
  %322 = vmatprep.mubr.f32.mxu0 0.0
  %323 = vmatmul.mubr.f32.gmra.mxu0 %v166
  %v324 = vpop.f32.mrf.mxu0
  %v325 = vadd.f32 0.0, %v324
  %v326 = vpop.f32.mrf.mxu0
  %327 = vdwg.mxu0
  %328 = vst [vmem:[%s3] sm:$0xff] %v235
  %329 = vst [vmem:[%s3 + $0x8] sm:$0xff] %v240
  %330 = vst [vmem:[%s3 + $0x10] sm:$0xff] %v245
  %331 = vst [vmem:[%s3 + $0x18] sm:$0xff] %v250
  %332 = vst [vmem:[%s3 + $0x20] sm:$0xff] %v255
  %333 = vst [vmem:[%s3 + $0x28] sm:$0xff] %v260
  %334 = vst [vmem:[%s3 + $0x30] sm:$0xff] %v265
  %335 = vst [vmem:[%s3 + $0x38] sm:$0xff] %v270
  %336 = vst [vmem:[%s3 + $0x40] sm:$0xff] %v275
  %337 = vst [vmem:[%s3 + $0x48] sm:$0xff] %v280
  %338 = vst [vmem:[%s3 + $0x50] sm:$0xff] %v285
  %339 = vst [vmem:[%s3 + $0x58] sm:$0xff] %v290
  %340 = vst [vmem:[%s3 + $0x60] sm:$0xff] %v295
  %341 = vst [vmem:[%s3 + $0x68] sm:$0xff] %v300
  %342 = vst [vmem:[%s3 + $0x70] sm:$0xff] %v305
  %343 = vst [vmem:[%s3 + $0x78] sm:$0xff] %v310
  %344 = vst [vmem:[%s3 + $0x80] sm:$0xff] %v315
  %345 = vst [vmem:[%s3 + $0x88] sm:$0xff] %v320
  %346 = vst [vmem:[%s3 + $0x90] sm:$0xff] %v325
  // Predicated region
  $region14: #{forward.1} parent=0 // pred_check
    _
  $region15: #{forward.1} parent=0 // pred_check_branch
    %348 = sbr.rel (0) target = $region17
  $region16: #{forward.1} parent=0 // pred_region
    _
  $region17: #{forward.1} parent=0 // pred_fallthru
    _
  // Predicated region
  $region18: #{forward.1} parent=0 // pred_check
    _
  $region19: #{forward.1} parent=0 // pred_check_branch
    %350 = sbr.rel (0) target = $region21
  $region20: #{forward.1} parent=0 // pred_region
    _
  $region21: #{forward.1} parent=0 // pred_fallthru
    _

</llo_original>
